<compile_context>
chip_gen: v7x
topology: tpu7x:2x2x1
jax: 0.10.0
libtpu: 0.0.40
codegen_flags: <defaults>
</compile_context>

<pallas_src>
import functools

import jax
import jax.numpy as jnp
from jax.experimental import pallas as pl
from jax.experimental.pallas import tpu as pltpu

H1 = 128        # fc1 out
H2 = 256        # fc2 out
OUT_ROWS = 8    # fc3 out (1) padded to 8 rows (one full sublane group)


def _round_up(x, m):
    return ((x + m - 1) // m) * m


def _critic_kernel(x_ref, w1_ref, b1_ref, w2_ref, b2_ref, w3_ref, b3_ref, v_ref):
    # Batch-in-lanes: x tile is (n_in, TB) bf16; activations are (out, TB).
    x = x_ref[...]

    # fc1 + ReLU -> (128, TB); f32 accumulate + f32 bias, ReLU in f32, then bf16.
    h1 = jnp.dot(w1_ref[...], x, preferred_element_type=jnp.float32) + b1_ref[...]
    h1 = jnp.maximum(h1, 0.0).astype(jnp.bfloat16)

    # fc2 + ReLU -> (256, TB)
    h2 = jnp.dot(w2_ref[...], h1, preferred_element_type=jnp.float32) + b2_ref[...]
    h2 = jnp.maximum(h2, 0.0).astype(jnp.bfloat16)

    # fc3 (row-padded to 8) -> (8, TB); only row 0 is the real value.
    v_ref[...] = jnp.dot(w3_ref[...], h2, preferred_element_type=jnp.float32) + b3_ref[...]


@functools.partial(jax.jit, static_argnames=("tb",))
def critic_forward(state, params, *, tb=512):
    """Returns value: (B, 1) f32, matching Critic.forward."""
    B, n_in = state.shape

    # Batch tile on the lane axis: multiple of 128, capped at `tb`.
    TB = min(tb, _round_up(B, 128))
    # v7x megacore: prefer >= 2 grid steps when the batch is big enough to split.
    if B > 128 and _round_up(B, TB) // TB < 2:
        TB = max(128, _round_up(-(-B // 2), 128))
    Bp = _round_up(B, TB)

    # Cast to bf16, transpose to batch-in-lanes, pad batch up to the grid (one XLA fusion).
    xT = jnp.pad(state.astype(jnp.bfloat16).T, ((0, 0), (0, Bp - B)))

    args = (xT,
            params["w1"], params["b1"],
            params["w2"], params["b2"],
            params["w3"], params["b3"])

    # Weights/biases: full-array blocks with a constant index_map -> fetched once,
    # stay VMEM-resident while batch tiles stream through the lanes.
    def const_spec(arr):
        return pl.BlockSpec(arr.shape, lambda i: (0, 0))

    out = pl.pallas_call(
        _critic_kernel,
        out_shape=jax.ShapeDtypeStruct((OUT_ROWS, Bp), jnp.float32),
        grid=(Bp // TB,),
        in_specs=[
            pl.BlockSpec((n_in, TB), lambda i: (0, i)),    # state (batch-in-lanes tiles)
            const_spec(params["w1"]), const_spec(params["b1"]),
            const_spec(params["w2"]), const_spec(params["b2"]),
            const_spec(params["w3"]), const_spec(params["b3"]),
        ],
        out_specs=pl.BlockSpec((OUT_ROWS, TB), lambda i: (0, i)),
        compiler_params=pltpu.CompilerParams(
            dimension_semantics=("parallel",),
            vmem_limit_bytes=32 << 20,
        ),
    )(*args)

    # Row 0 holds the real value head; padded batch columns are dropped.
    return out[0, :B].reshape(B, 1)


def init_params(key, n_inputs):
    """PyTorch nn.Linear default init: W, b ~ U(-1/sqrt(fan_in), +1/sqrt(fan_in)).
    Weights stored in PyTorch's natural (out, in) orientation, cast to bf16; biases f32
    stored as (out, 1) columns for lane-broadcast.  fc3 is zero-padded to OUT_ROWS rows."""
    def linear(k, fan_in, fan_out):
        kw, kb = jax.random.split(k)
        bound = 1.0 / jnp.sqrt(jnp.float32(fan_in))
        w = jax.random.uniform(kw, (fan_out, fan_in), jnp.float32, -bound, bound)
        b = jax.random.uniform(kb, (fan_out, 1), jnp.float32, -bound, bound)
        return w, b

    k1, k2, k3 = jax.random.split(key, 3)
    w1, b1 = linear(k1, n_inputs, H1)
    w2, b2 = linear(k2, H1, H2)
    w3, b3 = linear(k3, H2, 1)

    # Pad the value head to OUT_ROWS rows (extra rows are exact zeros).
    w3 = jnp.pad(w3, ((0, OUT_ROWS - 1), (0, 0)))
    b3 = jnp.pad(b3, ((0, OUT_ROWS - 1), (0, 0)))

    return {
        "w1": w1.astype(jnp.bfloat16), "b1": b1,
        "w2": w2.astype(jnp.bfloat16), "b2": b2,
        "w3": w3.astype(jnp.bfloat16), "b3": b3,
    }


def reference_forward(state, p):
    """Pure-JAX reference using the same bf16-weight / f32-accumulate transposed math."""
    x = state.astype(jnp.bfloat16).T
    h1 = jnp.dot(p["w1"], x, preferred_element_type=jnp.float32) + p["b1"]
    h1 = jnp.maximum(h1, 0.0).astype(jnp.bfloat16)
    h2 = jnp.dot(p["w2"], h1, preferred_element_type=jnp.float32) + p["b2"]
    h2 = jnp.maximum(h2, 0.0).astype(jnp.bfloat16)
    v = jnp.dot(p["w3"], h2, preferred_element_type=jnp.float32) + p["b3"]
    return v[0].reshape(-1, 1)


if __name__ == "__main__":
    key = jax.random.PRNGKey(0)
    k_params, k_state = jax.random.split(key)

    B, n_inputs = 8, 8   # small observation vector, small batch
    params = init_params(k_params, n_inputs)
    state = jax.random.normal(k_state, (B, n_inputs), jnp.float32)

    value = critic_forward(state, params)
    value = jax.block_until_ready(value)

    v_ref = reference_forward(state, params)
    assert value.shape == (B, 1), value.shape
    assert jnp.allclose(value, v_ref, atol=1e-2, rtol=1e-2), (
        float(jnp.max(jnp.abs(value - v_ref))))

    print("KERNEL_OK")
</pallas_src>

<mosaic_0001>
module attributes {stable_mosaic.version = 11 : i64} {
  func.func @_critic_kernel(%arg0: i32, %arg1: memref<8x128xbf16, #tpu.memory_space<vmem>>, %arg2: memref<128x8xbf16, #tpu.memory_space<vmem>>, %arg3: memref<128x1xf32, #tpu.memory_space<vmem>>, %arg4: memref<256x128xbf16, #tpu.memory_space<vmem>>, %arg5: memref<256x1xf32, #tpu.memory_space<vmem>>, %arg6: memref<8x256xbf16, #tpu.memory_space<vmem>>, %arg7: memref<8x1xf32, #tpu.memory_space<vmem>>, %arg8: memref<8x128xf32, #tpu.memory_space<vmem>>) attributes {dimension_semantics = [#tpu.dimension_semantics<parallel>], iteration_bounds = array<i64: 1>, scalar_prefetch = 0 : i64, scratch_operands = 0 : i64, tpu.core_type = #tpu.core_type<tc>, window_params = [{transform_indices = @transform_0, window_bounds = array<i64: 8, 128>}, {pipeline_mode = #tpu.pipeline_mode<synchronous>, transform_indices = @transform_1, window_bounds = array<i64: 128, 8>}, {pipeline_mode = #tpu.pipeline_mode<synchronous>, transform_indices = @transform_2, window_bounds = array<i64: 128, 1>}, {pipeline_mode = #tpu.pipeline_mode<synchronous>, transform_indices = @transform_3, window_bounds = array<i64: 256, 128>}, {pipeline_mode = #tpu.pipeline_mode<synchronous>, transform_indices = @transform_4, window_bounds = array<i64: 256, 1>}, {pipeline_mode = #tpu.pipeline_mode<synchronous>, transform_indices = @transform_5, window_bounds = array<i64: 8, 256>}, {pipeline_mode = #tpu.pipeline_mode<synchronous>, transform_indices = @transform_6, window_bounds = array<i64: 8, 1>}, {transform_indices = @transform_7, window_bounds = array<i64: 8, 128>}]} {
    %c0 = arith.constant 0 : index
    %c0_0 = arith.constant 0 : index
    %0 = vector.load %arg1[%c0, %c0_0] : memref<8x128xbf16, #tpu.memory_space<vmem>>, vector<8x128xbf16>
    %c0_1 = arith.constant 0 : index
    %c0_2 = arith.constant 0 : index
    %1 = vector.load %arg2[%c0_1, %c0_2] : memref<128x8xbf16, #tpu.memory_space<vmem>>, vector<128x8xbf16>
    %cst = arith.constant dense<0.000000e+00> : vector<128x128xf32>
    %2 = tpu.matmul %1, %0, %cst {dimension_numbers = #tpu.dot_dimension_numbers<[1], [0], [0], [1], [0, 0, 1, 1], [], []>} : vector<128x8xbf16>, vector<8x128xbf16>, vector<128x128xf32> -> vector<128x128xf32>
    %c0_3 = arith.constant 0 : index
    %c0_4 = arith.constant 0 : index
    %3 = vector.load %arg3[%c0_3, %c0_4] : memref<128x1xf32, #tpu.memory_space<vmem>>, vector<128x1xf32>
    %4 = vector.broadcast %3 : vector<128x1xf32> to vector<128x128xf32>
    %5 = arith.addf %2, %4 : vector<128x128xf32>
    %cst_5 = arith.constant 0.000000e+00 : f32
    %6 = vector.broadcast %cst_5 : f32 to vector<128x128xf32>
    %7 = arith.maximumf %5, %6 : vector<128x128xf32>
    %8 = arith.truncf %7 : vector<128x128xf32> to vector<128x128xbf16>
    %c0_6 = arith.constant 0 : index
    %c0_7 = arith.constant 0 : index
    %9 = vector.load %arg4[%c0_6, %c0_7] : memref<256x128xbf16, #tpu.memory_space<vmem>>, vector<256x128xbf16>
    %cst_8 = arith.constant dense<0.000000e+00> : vector<256x128xf32>
    %10 = tpu.matmul %9, %8, %cst_8 {dimension_numbers = #tpu.dot_dimension_numbers<[1], [0], [0], [1], [0, 0, 1, 1], [], []>} : vector<256x128xbf16>, vector<128x128xbf16>, vector<256x128xf32> -> vector<256x128xf32>
    %c0_9 = arith.constant 0 : index
    %c0_10 = arith.constant 0 : index
    %11 = vector.load %arg5[%c0_9, %c0_10] : memref<256x1xf32, #tpu.memory_space<vmem>>, vector<256x1xf32>
    %12 = vector.broadcast %11 : vector<256x1xf32> to vector<256x128xf32>
    %13 = arith.addf %10, %12 : vector<256x128xf32>
    %cst_11 = arith.constant 0.000000e+00 : f32
    %14 = vector.broadcast %cst_11 : f32 to vector<256x128xf32>
    %15 = arith.maximumf %13, %14 : vector<256x128xf32>
    %16 = arith.truncf %15 : vector<256x128xf32> to vector<256x128xbf16>
    %c0_12 = arith.constant 0 : index
    %c0_13 = arith.constant 0 : index
    %17 = vector.load %arg6[%c0_12, %c0_13] : memref<8x256xbf16, #tpu.memory_space<vmem>>, vector<8x256xbf16>
    %cst_14 = arith.constant dense<0.000000e+00> : vector<8x128xf32>
    %18 = tpu.matmul %17, %16, %cst_14 {dimension_numbers = #tpu.dot_dimension_numbers<[1], [0], [0], [1], [0, 0, 1, 1], [], []>} : vector<8x256xbf16>, vector<256x128xbf16>, vector<8x128xf32> -> vector<8x128xf32>
    %c0_15 = arith.constant 0 : index
    %c0_16 = arith.constant 0 : index
    %19 = vector.load %arg7[%c0_15, %c0_16] : memref<8x1xf32, #tpu.memory_space<vmem>>, vector<8x1xf32>
    %20 = vector.broadcast %19 : vector<8x1xf32> to vector<8x128xf32>
    %21 = arith.addf %18, %20 : vector<8x128xf32>
    %c0_17 = arith.constant 0 : index
    %c0_18 = arith.constant 0 : index
    %22 = vector.load %arg8[%c0_17, %c0_18] : memref<8x128xf32, #tpu.memory_space<vmem>>, vector<8x128xf32>
    tpu.vector_store %arg8[%c0_17, %c0_18], %21 {strides = array<i32>} : memref<8x128xf32, #tpu.memory_space<vmem>>, vector<8x128xf32>,
    return
  }
  func.func @transform_0(%arg0: i32) -> (i32, i32) {
    %c0_i32 = arith.constant 0 : i32
    %c0_i32_0 = arith.constant 0 : i32
    return %c0_i32, %arg0 : i32, i32
  }
  func.func @transform_1(%arg0: i32) -> (i32, i32) {
    %c0_i32 = arith.constant 0 : i32
    %c0_i32_0 = arith.constant 0 : i32
    %c0_i32_1 = arith.constant 0 : i32
    return %c0_i32, %c0_i32_0 : i32, i32
  }
  func.func @transform_2(%arg0: i32) -> (i32, i32) {
    %c0_i32 = arith.constant 0 : i32
    %c0_i32_0 = arith.constant 0 : i32
    %c0_i32_1 = arith.constant 0 : i32
    return %c0_i32, %c0_i32_0 : i32, i32
  }
  func.func @transform_3(%arg0: i32) -> (i32, i32) {
    %c0_i32 = arith.constant 0 : i32
    %c0_i32_0 = arith.constant 0 : i32
    %c0_i32_1 = arith.constant 0 : i32
    return %c0_i32, %c0_i32_0 : i32, i32
  }
  func.func @transform_4(%arg0: i32) -> (i32, i32) {
    %c0_i32 = arith.constant 0 : i32
    %c0_i32_0 = arith.constant 0 : i32
    %c0_i32_1 = arith.constant 0 : i32
    return %c0_i32, %c0_i32_0 : i32, i32
  }
  func.func @transform_5(%arg0: i32) -> (i32, i32) {
    %c0_i32 = arith.constant 0 : i32
    %c0_i32_0 = arith.constant 0 : i32
    %c0_i32_1 = arith.constant 0 : i32
    return %c0_i32, %c0_i32_0 : i32, i32
  }
  func.func @transform_6(%arg0: i32) -> (i32, i32) {
    %c0_i32 = arith.constant 0 : i32
    %c0_i32_0 = arith.constant 0 : i32
    %c0_i32_1 = arith.constant 0 : i32
    return %c0_i32, %c0_i32_0 : i32, i32
  }
  func.func @transform_7(%arg0: i32) -> (i32, i32) {
    %c0_i32 = arith.constant 0 : i32
    %c0_i32_0 = arith.constant 0 : i32
    return %c0_i32, %arg0 : i32, i32
  }
}

</mosaic_0001>

<llo_original>
// kernel: critic_forward.1
$region0: #{critic_forward.1}
  #allocation0 [shape = 'u32[]', space=smem, size = 0x4, offset = 0x4, fixed_abs, tag = 'smem constant byte address 0x4 - core index']
  #allocation1 [shape = 'u32[144,128]{1,0:T(1,128)}', space=vmem, size = 0x12000, scoped, tag = 'internal scratch']
  %s0 = inlined_call_operand.vmem [shape: bf16[8,128], index: 0, kind: input, shape index: {}]
  %s1 = inlined_call_operand.vmem [shape: bf16[128,8], index: 1, kind: input, shape index: {}]
  %s2 = inlined_call_operand.vmem [shape: f32[128,1], index: 2, kind: input, shape index: {}]
  %s3 = inlined_call_operand.vmem [shape: bf16[256,128], index: 3, kind: input, shape index: {}]
  %s4 = inlined_call_operand.vmem [shape: f32[256,1], index: 4, kind: input, shape index: {}]
  %s5 = inlined_call_operand.vmem [shape: bf16[8,256], index: 5, kind: input, shape index: {}]
  %s6 = inlined_call_operand.vmem [shape: f32[8,1], index: 6, kind: input, shape index: {}]
  %s7 = inlined_call_operand.vmem [shape: f32[8,128], index: 7, kind: output, shape index: {}]
  %s8 = sld [smem:[#allocation0]]
  $region38: #{critic_forward.1} parent=0
    _
  %s10 = ssub.s32 1, %s8
  %s11 = scalar_select 0, %s10, %s8
  // Predicated region
  $region2: #{critic_forward.1} parent=0 // pred_check
    _
  $region3: #{critic_forward.1} parent=0 // pred_check_branch
    %13 = sbr.rel (0) target = $region5
  $region4: #{critic_forward.1} parent=0 // pred_region
    _
  $region5: #{critic_forward.1} parent=0 // pred_fallthru
    _
  // Predicated region
  $region6: #{critic_forward.1} parent=0 // pred_check
    _
  $region7: #{critic_forward.1} parent=0 // pred_check_branch
    %15 = sbr.rel (0) target = $region9
  $region8: #{critic_forward.1} parent=0 // pred_region
    _
  $region9: #{critic_forward.1} parent=0 // pred_fallthru
    _
  // Predicated region
  $region10: #{critic_forward.1} parent=0 // pred_check
    _
  $region11: #{critic_forward.1} parent=0 // pred_check_branch
    %17 = sbr.rel (0) target = $region13
  $region12: #{critic_forward.1} parent=0 // pred_region
    _
  $region13: #{critic_forward.1} parent=0 // pred_fallthru
    _
  // Predicated region
  $region14: #{critic_forward.1} parent=0 // pred_check
    _
  $region15: #{critic_forward.1} parent=0 // pred_check_branch
    %19 = sbr.rel (0) target = $region17
  $region16: #{critic_forward.1} parent=0 // pred_region
    _
  $region17: #{critic_forward.1} parent=0 // pred_fallthru
    _
  // Predicated region
  $region18: #{critic_forward.1} parent=0 // pred_check
    _
  $region19: #{critic_forward.1} parent=0 // pred_check_branch
    %21 = sbr.rel (0) target = $region21
  $region20: #{critic_forward.1} parent=0 // pred_region
    _
  $region21: #{critic_forward.1} parent=0 // pred_fallthru
    _
  // Predicated region
  $region22: #{critic_forward.1} parent=0 // pred_check
    _
  $region23: #{critic_forward.1} parent=0 // pred_check_branch
    %23 = sbr.rel (0) target = $region25
  $region24: #{critic_forward.1} parent=0 // pred_region
    _
  $region25: #{critic_forward.1} parent=0 // pred_fallthru
    _
  // Predicated region
  $region26: #{critic_forward.1} parent=0 // pred_check
    _
  $region27: #{critic_forward.1} parent=0 // pred_check_branch
    %25 = sbr.rel (0) target = $region29
  $region28: #{critic_forward.1} parent=0 // pred_region
    _
  $region29: #{critic_forward.1} parent=0 // pred_fallthru
    _
  %v27 = vld [vmem:[%s0] sm:$0xf]
  %v28 = vld [vmem:[%s1] sm:$0xf]
  %v29 = vld [vmem:[%s1 + $0x4] sm:$0xf]
  %v30 = vld [vmem:[%s1 + $0x8] sm:$0xf]
  %v31 = vld [vmem:[%s1 + $0xc] sm:$0xf]
  %v32 = vld [vmem:[%s1 + $0x10] sm:$0xf]
  %v33 = vld [vmem:[%s1 + $0x14] sm:$0xf]
  %v34 = vld [vmem:[%s1 + $0x18] sm:$0xf]
  %v35 = vld [vmem:[%s1 + $0x1c] sm:$0xf]
  %v36 = vld [vmem:[%s1 + $0x20] sm:$0xf]
  %v37 = vld [vmem:[%s1 + $0x24] sm:$0xf]
  %v38 = vld [vmem:[%s1 + $0x28] sm:$0xf]
  %v39 = vld [vmem:[%s1 + $0x2c] sm:$0xf]
  %v40 = vld [vmem:[%s1 + $0x30] sm:$0xf]
  %v41 = vld [vmem:[%s1 + $0x34] sm:$0xf]
  %v42 = vld [vmem:[%s1 + $0x38] sm:$0xf]
  %v43 = vld [vmem:[%s1 + $0x3c] sm:$0xf]
  %v44 = vld [vmem:[%s2] sm:$0xff]
  %v45 = vld [vmem:[%s2 + $0x8] sm:$0xff]
  %v46 = vld [vmem:[%s2 + $0x10] sm:$0xff]
  %v47 = vld [vmem:[%s2 + $0x18] sm:$0xff]
  %v48 = vld [vmem:[%s2 + $0x20] sm:$0xff]
  %v49 = vld [vmem:[%s2 + $0x28] sm:$0xff]
  %v50 = vld [vmem:[%s2 + $0x30] sm:$0xff]
  %v51 = vld [vmem:[%s2 + $0x38] sm:$0xff]
  %v52 = vld [vmem:[%s2 + $0x40] sm:$0xff]
  %v53 = vld [vmem:[%s2 + $0x48] sm:$0xff]
  %v54 = vld [vmem:[%s2 + $0x50] sm:$0xff]
  %v55 = vld [vmem:[%s2 + $0x58] sm:$0xff]
  %v56 = vld [vmem:[%s2 + $0x60] sm:$0xff]
  %v57 = vld [vmem:[%s2 + $0x68] sm:$0xff]
  %v58 = vld [vmem:[%s2 + $0x70] sm:$0xff]
  %v59 = vld [vmem:[%s2 + $0x78] sm:$0xff]
  %61 = vset.pattern.permute.xlu0 0
  %62 = vperm.xlu0 %61, %v44
  %v63 = vpop.permute.xlu0 %62
  %66 = vset.pattern.permute.xlu0 0
  %67 = vperm.xlu0 %66, %v45
  %v68 = vpop.permute.xlu0 %67
  %71 = vset.pattern.permute.xlu0 0
  %72 = vperm.xlu0 %71, %v46
  %v73 = vpop.permute.xlu0 %72
  %76 = vset.pattern.permute.xlu0 0
  %77 = vperm.xlu0 %76, %v47
  %v78 = vpop.permute.xlu0 %77
  %81 = vset.pattern.permute.xlu0 0
  %82 = vperm.xlu0 %81, %v48
  %v83 = vpop.permute.xlu0 %82
  %86 = vset.pattern.permute.xlu0 0
  %87 = vperm.xlu0 %86, %v49
  %v88 = vpop.permute.xlu0 %87
  %91 = vset.pattern.permute.xlu0 0
  %92 = vperm.xlu0 %91, %v50
  %v93 = vpop.permute.xlu0 %92
  %96 = vset.pattern.permute.xlu0 0
  %97 = vperm.xlu0 %96, %v51
  %v98 = vpop.permute.xlu0 %97
  %101 = vset.pattern.permute.xlu0 0
  %102 = vperm.xlu0 %101, %v52
  %v103 = vpop.permute.xlu0 %102
  %106 = vset.pattern.permute.xlu0 0
  %107 = vperm.xlu0 %106, %v53
  %v108 = vpop.permute.xlu0 %107
  %111 = vset.pattern.permute.xlu0 0
  %112 = vperm.xlu0 %111, %v54
  %v113 = vpop.permute.xlu0 %112
  %116 = vset.pattern.permute.xlu0 0
  %117 = vperm.xlu0 %116, %v55
  %v118 = vpop.permute.xlu0 %117
  %121 = vset.pattern.permute.xlu0 0
  %122 = vperm.xlu0 %121, %v56
  %v123 = vpop.permute.xlu0 %122
  %126 = vset.pattern.permute.xlu0 0
  %127 = vperm.xlu0 %126, %v57
  %v128 = vpop.permute.xlu0 %127
  %131 = vset.pattern.permute.xlu0 0
  %132 = vperm.xlu0 %131, %v58
  %v133 = vpop.permute.xlu0 %132
  %136 = vset.pattern.permute.xlu0 0
  %137 = vperm.xlu0 %136, %v59
  %v138 = vpop.permute.xlu0 %137
  %v156 = vunpack.c.l.b16 %v28
  %v157 = vunpack.c.l.b16 %v29
  %v158 = vunpack.c.l.b16 %v30
  %v159 = vunpack.c.l.b16 %v31
  %v160 = vunpack.c.l.b16 %v32
  %v161 = vunpack.c.l.b16 %v33
  %v162 = vunpack.c.l.b16 %v34
  %v163 = vunpack.c.l.b16 %v35
  %v164 = vunpack.c.l.b16 %v36
  %v165 = vunpack.c.l.b16 %v37
  %v166 = vunpack.c.l.b16 %v38
  %v167 = vunpack.c.l.b16 %v39
  %v168 = vunpack.c.l.b16 %v40
  %v169 = vunpack.c.l.b16 %v41
  %v170 = vunpack.c.l.b16 %v42
  %v171 = vunpack.c.l.b16 %v43
  %v172 = vpack.c.b16 %v157, %v156
  %v173 = vpack.c.b16 %v159, %v158
  %v174 = vpack.c.b16 %v161, %v160
  %v175 = vpack.c.b16 %v163, %v162
  %v176 = vpack.c.b16 %v165, %v164
  %v177 = vpack.c.b16 %v167, %v166
  %v178 = vpack.c.b16 %v169, %v168
  %v179 = vpack.c.b16 %v171, %v170
  %vm180 = vcmask 64512
  %v182 = vsel %vm180, %v172, 0
  %v185 = vsel %vm180, %v173, 0
  %v188 = vsel %vm180, %v174, 0
  %v191 = vsel %vm180, %v175, 0
  %v194 = vsel %vm180, %v176, 0
  %v197 = vsel %vm180, %v177, 0
  %v200 = vsel %vm180, %v178, 0
  %v203 = vsel %vm180, %v179, 0
  %vm205 = vcmask 1043456
  %v207 = vsel %vm205, %v27, 0
  %209 = vmatprep.subr.bf16.mxu0 0
  %210 = vmatpush1.bf16.msra.mxu0 %v207
  %211 = vmatprep.subr.bf16.mxu0 0
  %212 = vmatpush1.bf16.msra.mxu0 0
  %213 = vmatprep.subr.bf16.mxu0 0
  %214 = vmatpush1.bf16.msra.mxu0 0
  %215 = vmatprep.subr.bf16.mxu0 0
  %216 = vmatpush1.bf16.msra.mxu0 0
  %217 = vmatprep.subr.bf16.mxu0 0
  %218 = vmatpush1.bf16.msra.mxu0 0
  %219 = vmatprep.subr.bf16.mxu0 0
  %220 = vmatpush1.bf16.msra.mxu0 0
  %221 = vmatprep.subr.bf16.mxu0 0
  %222 = vmatpush1.bf16.msra.mxu0 0
  %223 = vmatprep.subr.bf16.mxu0 0
  %224 = vmatpush1.bf16.msra.mxu0 0
  %225 = vmatprep.subr.bf16.mxu0 0
  %226 = vmatpush1.bf16.msra.mxu0 0
  %227 = vmatprep.subr.bf16.mxu0 0
  %228 = vmatpush1.bf16.msra.mxu0 0
  %229 = vmatprep.subr.bf16.mxu0 0
  %230 = vmatpush1.bf16.msra.mxu0 0
  %231 = vmatprep.subr.bf16.mxu0 0
  %232 = vmatpush1.bf16.msra.mxu0 0
  %233 = vmatprep.subr.bf16.mxu0 0
  %234 = vmatpush1.bf16.msra.mxu0 0
  %235 = vmatprep.subr.bf16.mxu0 0
  %236 = vmatpush1.bf16.msra.mxu0 0
  %237 = vmatprep.subr.bf16.mxu0 0
  %238 = vmatpush1.bf16.msra.mxu0 0
  %239 = vmatprep.subr.bf16.mxu0 0
  %240 = vmatpush1.bf16.msra.mxu0 0
  %241 = vmatprep.mubr.bf16.mxu0 0
  %242 = vmatmul.mubr.bf16.gmra.mrb[0].mxu0 %v182
  %v243 = vpop.f32.mrb[0].mxu0
  %v244 = vadd.f32 %v63, %v243
  %v245 = vpop.f32.mrb[0].mxu0
  %v246 = vpop.f32.mrb[0].mxu0
  %v247 = vadd.f32 %v68, %v246
  %v248 = vpop.f32.mrb[0].mxu0
  %249 = vmatprep.mubr.bf16.mxu0 0
  %250 = vmatmul.mubr.bf16.gmra.mrb[0].mxu0 %v185
  %v251 = vpop.f32.mrb[0].mxu0
  %v252 = vadd.f32 %v73, %v251
  %v253 = vpop.f32.mrb[0].mxu0
  %v254 = vpop.f32.mrb[0].mxu0
  %v255 = vadd.f32 %v78, %v254
  %v256 = vpop.f32.mrb[0].mxu0
  %257 = vmatprep.mubr.bf16.mxu0 0
  %258 = vmatmul.mubr.bf16.gmra.mrb[0].mxu0 %v188
  %v259 = vpop.f32.mrb[0].mxu0
  %v260 = vadd.f32 %v83, %v259
  %v261 = vpop.f32.mrb[0].mxu0
  %v262 = vpop.f32.mrb[0].mxu0
  %v263 = vadd.f32 %v88, %v262
  %v264 = vpop.f32.mrb[0].mxu0
  %265 = vmatprep.mubr.bf16.mxu0 0
  %266 = vmatmul.mubr.bf16.gmra.mrb[0].mxu0 %v191
  %v267 = vpop.f32.mrb[0].mxu0
  %v268 = vadd.f32 %v93, %v267
  %v269 = vpop.f32.mrb[0].mxu0
  %v270 = vpop.f32.mrb[0].mxu0
  %v271 = vadd.f32 %v98, %v270
  %v272 = vpop.f32.mrb[0].mxu0
  %273 = vmatprep.mubr.bf16.mxu0 0
  %274 = vmatmul.mubr.bf16.gmra.mrb[0].mxu0 %v194
  %v275 = vpop.f32.mrb[0].mxu0
  %v276 = vadd.f32 %v103, %v275
  %v277 = vpop.f32.mrb[0].mxu0
  %v278 = vpop.f32.mrb[0].mxu0
  %v279 = vadd.f32 %v108, %v278
  %v280 = vpop.f32.mrb[0].mxu0
  %281 = vmatprep.mubr.bf16.mxu0 0
  %282 = vmatmul.mubr.bf16.gmra.mrb[0].mxu0 %v197
  %v283 = vpop.f32.mrb[0].mxu0
  %v284 = vadd.f32 %v113, %v283
  %v285 = vpop.f32.mrb[0].mxu0
  %v286 = vpop.f32.mrb[0].mxu0
  %v287 = vadd.f32 %v118, %v286
  %v288 = vpop.f32.mrb[0].mxu0
  %289 = vmatprep.mubr.bf16.mxu0 0
  %290 = vmatmul.mubr.bf16.gmra.mrb[0].mxu0 %v200
  %v291 = vpop.f32.mrb[0].mxu0
  %v292 = vadd.f32 %v123, %v291
  %v293 = vpop.f32.mrb[0].mxu0
  %v294 = vpop.f32.mrb[0].mxu0
  %v295 = vadd.f32 %v128, %v294
  %v296 = vpop.f32.mrb[0].mxu0
  %297 = vmatprep.mubr.bf16.mxu0 0
  %298 = vmatmul.mubr.bf16.gmra.mrb[0].mxu0 %v203
  %v299 = vpop.f32.mrb[0].mxu0
  %v300 = vadd.f32 %v133, %v299
  %v301 = vpop.f32.mrb[0].mxu0
  %v302 = vpop.f32.mrb[0].mxu0
  %v303 = vadd.f32 %v138, %v302
  %v304 = vpop.f32.mrb[0].mxu0
  %305 = vdwg.mxu0
  %v306 = vmax.f32 %v244, 0.0
  %v307 = vmax.f32 %v247, 0.0
  %v308 = vmax.f32 %v252, 0.0
  %v309 = vmax.f32 %v255, 0.0
  %v310 = vmax.f32 %v260, 0.0
  %v311 = vmax.f32 %v263, 0.0
  %v312 = vmax.f32 %v268, 0.0
  %v313 = vmax.f32 %v271, 0.0
  %v314 = vmax.f32 %v276, 0.0
  %v315 = vmax.f32 %v279, 0.0
  %v316 = vmax.f32 %v284, 0.0
  %v317 = vmax.f32 %v287, 0.0
  %v318 = vmax.f32 %v292, 0.0
  %v319 = vmax.f32 %v295, 0.0
  %v320 = vmax.f32 %v300, 0.0
  %v321 = vmax.f32 %v303, 0.0
  %v322 = vpack.c.bf16 %v307, %v306
  %v323 = vpack.c.bf16 %v309, %v308
  %v324 = vpack.c.bf16 %v311, %v310
  %v325 = vpack.c.bf16 %v313, %v312
  %v326 = vpack.c.bf16 %v315, %v314
  %v327 = vpack.c.bf16 %v317, %v316
  %v328 = vpack.c.bf16 %v319, %v318
  %v329 = vpack.c.bf16 %v321, %v320
  %v330 = vld [vmem:[%s3] sm:$0xf]
  %v331 = vld [vmem:[%s3 + $0x4] sm:$0xf]
  %v332 = vld [vmem:[%s3 + $0x8] sm:$0xf]
  %v333 = vld [vmem:[%s3 + $0xc] sm:$0xf]
  %v334 = vld [vmem:[%s3 + $0x10] sm:$0xf]
  %v335 = vld [vmem:[%s3 + $0x14] sm:$0xf]
  %v336 = vld [vmem:[%s3 + $0x18] sm:$0xf]
  %v337 = vld [vmem:[%s3 + $0x1c] sm:$0xf]
  %v338 = vld [vmem:[%s3 + $0x20] sm:$0xf]
  %v339 = vld [vmem:[%s3 + $0x24] sm:$0xf]
  %v340 = vld [vmem:[%s3 + $0x28] sm:$0xf]
  %v341 = vld [vmem:[%s3 + $0x2c] sm:$0xf]
  %v342 = vld [vmem:[%s3 + $0x30] sm:$0xf]
  %v343 = vld [vmem:[%s3 + $0x34] sm:$0xf]
  %v344 = vld [vmem:[%s3 + $0x38] sm:$0xf]
  %v345 = vld [vmem:[%s3 + $0x3c] sm:$0xf]
  %v346 = vld [vmem:[%s3 + $0x40] sm:$0xf]
  %v347 = vld [vmem:[%s3 + $0x44] sm:$0xf]
  %v348 = vld [vmem:[%s3 + $0x48] sm:$0xf]
  %v349 = vld [vmem:[%s3 + $0x4c] sm:$0xf]
  %v350 = vld [vmem:[%s3 + $0x50] sm:$0xf]
  %v351 = vld [vmem:[%s3 + $0x54] sm:$0xf]
  %v352 = vld [vmem:[%s3 + $0x58] sm:$0xf]
  %v353 = vld [vmem:[%s3 + $0x5c] sm:$0xf]
  %v354 = vld [vmem:[%s3 + $0x60] sm:$0xf]
  %v355 = vld [vmem:[%s3 + $0x64] sm:$0xf]
  %v356 = vld [vmem:[%s3 + $0x68] sm:$0xf]
  %v357 = vld [vmem:[%s3 + $0x6c] sm:$0xf]
  %v358 = vld [vmem:[%s3 + $0x70] sm:$0xf]
  %v359 = vld [vmem:[%s3 + $0x74] sm:$0xf]
  %v360 = vld [vmem:[%s3 + $0x78] sm:$0xf]
  %v361 = vld [vmem:[%s3 + $0x7c] sm:$0xf]
  %v362 = vld [vmem:[%s4] sm:$0xff]
  %v363 = vld [vmem:[%s4 + $0x8] sm:$0xff]
  %v364 = vld [vmem:[%s4 + $0x10] sm:$0xff]
  %v365 = vld [vmem:[%s4 + $0x18] sm:$0xff]
  %v366 = vld [vmem:[%s4 + $0x20] sm:$0xff]
  %v367 = vld [vmem:[%s4 + $0x28] sm:$0xff]
  %v368 = vld [vmem:[%s4 + $0x30] sm:$0xff]
  %v369 = vld [vmem:[%s4 + $0x38] sm:$0xff]
  %v370 = vld [vmem:[%s4 + $0x40] sm:$0xff]
  %v371 = vld [vmem:[%s4 + $0x48] sm:$0xff]
  %v372 = vld [vmem:[%s4 + $0x50] sm:$0xff]
  %v373 = vld [vmem:[%s4 + $0x58] sm:$0xff]
  %v374 = vld [vmem:[%s4 + $0x60] sm:$0xff]
  %v375 = vld [vmem:[%s4 + $0x68] sm:$0xff]
  %v376 = vld [vmem:[%s4 + $0x70] sm:$0xff]
  %v377 = vld [vmem:[%s4 + $0x78] sm:$0xff]
  %v378 = vld [vmem:[%s4 + $0x80] sm:$0xff]
  %v379 = vld [vmem:[%s4 + $0x88] sm:$0xff]
  %v380 = vld [vmem:[%s4 + $0x90] sm:$0xff]
  %v381 = vld [vmem:[%s4 + $0x98] sm:$0xff]
  %v382 = vld [vmem:[%s4 + $0xa0] sm:$0xff]
  %v383 = vld [vmem:[%s4 + $0xa8] sm:$0xff]
  %v384 = vld [vmem:[%s4 + $0xb0] sm:$0xff]
  %v385 = vld [vmem:[%s4 + $0xb8] sm:$0xff]
  %v386 = vld [vmem:[%s4 + $0xc0] sm:$0xff]
  %v387 = vld [vmem:[%s4 + $0xc8] sm:$0xff]
  %v388 = vld [vmem:[%s4 + $0xd0] sm:$0xff]
  %v389 = vld [vmem:[%s4 + $0xd8] sm:$0xff]
  %v390 = vld [vmem:[%s4 + $0xe0] sm:$0xff]
  %v391 = vld [vmem:[%s4 + $0xe8] sm:$0xff]
  %v392 = vld [vmem:[%s4 + $0xf0] sm:$0xff]
  %v393 = vld [vmem:[%s4 + $0xf8] sm:$0xff]
  %395 = vset.pattern.permute.xlu0 0
  %396 = vperm.xlu0 %395, %v362
  %v397 = vpop.permute.xlu0 %396
  %400 = vset.pattern.permute.xlu0 0
  %401 = vperm.xlu0 %400, %v363
  %v402 = vpop.permute.xlu0 %401
  %405 = vset.pattern.permute.xlu0 0
  %406 = vperm.xlu0 %405, %v364
  %v407 = vpop.permute.xlu0 %406
  %410 = vset.pattern.permute.xlu0 0
  %411 = vperm.xlu0 %410, %v365
  %v412 = vpop.permute.xlu0 %411
  %415 = vset.pattern.permute.xlu0 0
  %416 = vperm.xlu0 %415, %v366
  %v417 = vpop.permute.xlu0 %416
  %420 = vset.pattern.permute.xlu0 0
  %421 = vperm.xlu0 %420, %v367
  %v422 = vpop.permute.xlu0 %421
  %425 = vset.pattern.permute.xlu0 0
  %426 = vperm.xlu0 %425, %v368
  %v427 = vpop.permute.xlu0 %426
  %430 = vset.pattern.permute.xlu0 0
  %431 = vperm.xlu0 %430, %v369
  %v432 = vpop.permute.xlu0 %431
  %435 = vset.pattern.permute.xlu0 0
  %436 = vperm.xlu0 %435, %v370
  %v437 = vpop.permute.xlu0 %436
  %440 = vset.pattern.permute.xlu0 0
  %441 = vperm.xlu0 %440, %v371
  %v442 = vpop.permute.xlu0 %441
  %445 = vset.pattern.permute.xlu0 0
  %446 = vperm.xlu0 %445, %v372
  %v447 = vpop.permute.xlu0 %446
  %450 = vset.pattern.permute.xlu0 0
  %451 = vperm.xlu0 %450, %v373
  %v452 = vpop.permute.xlu0 %451
  %455 = vset.pattern.permute.xlu0 0
  %456 = vperm.xlu0 %455, %v374
  %v457 = vpop.permute.xlu0 %456
  %460 = vset.pattern.permute.xlu0 0
  %461 = vperm.xlu0 %460, %v375
  %v462 = vpop.permute.xlu0 %461
  %465 = vset.pattern.permute.xlu0 0
  %466 = vperm.xlu0 %465, %v376
  %v467 = vpop.permute.xlu0 %466
  %470 = vset.pattern.permute.xlu0 0
  %471 = vperm.xlu0 %470, %v377
  %v472 = vpop.permute.xlu0 %471
  %475 = vset.pattern.permute.xlu0 0
  %476 = vperm.xlu0 %475, %v378
  %v477 = vpop.permute.xlu0 %476
  %480 = vset.pattern.permute.xlu0 0
  %481 = vperm.xlu0 %480, %v379
  %v482 = vpop.permute.xlu0 %481
  %485 = vset.pattern.permute.xlu0 0
  %486 = vperm.xlu0 %485, %v380
  %v487 = vpop.permute.xlu0 %486
  %490 = vset.pattern.permute.xlu0 0
  %491 = vperm.xlu0 %490, %v381
  %v492 = vpop.permute.xlu0 %491
  %495 = vset.pattern.permute.xlu0 0
  %496 = vperm.xlu0 %495, %v382
  %v497 = vpop.permute.xlu0 %496
  %500 = vset.pattern.permute.xlu0 0
  %501 = vperm.xlu0 %500, %v383
  %v502 = vpop.permute.xlu0 %501
  %505 = vset.pattern.permute.xlu0 0
  %506 = vperm.xlu0 %505, %v384
  %v507 = vpop.permute.xlu0 %506
  %510 = vset.pattern.permute.xlu0 0
  %511 = vperm.xlu0 %510, %v385
  %v512 = vpop.permute.xlu0 %511
  %515 = vset.pattern.permute.xlu0 0
  %516 = vperm.xlu0 %515, %v386
  %v517 = vpop.permute.xlu0 %516
  %520 = vset.pattern.permute.xlu0 0
  %521 = vperm.xlu0 %520, %v387
  %v522 = vpop.permute.xlu0 %521
  %525 = vset.pattern.permute.xlu0 0
  %526 = vperm.xlu0 %525, %v388
  %v527 = vpop.permute.xlu0 %526
  %530 = vset.pattern.permute.xlu0 0
  %531 = vperm.xlu0 %530, %v389
  %v532 = vpop.permute.xlu0 %531
  %535 = vset.pattern.permute.xlu0 0
  %536 = vperm.xlu0 %535, %v390
  %v537 = vpop.permute.xlu0 %536
  %540 = vset.pattern.permute.xlu0 0
  %541 = vperm.xlu0 %540, %v391
  %v542 = vpop.permute.xlu0 %541
  %545 = vset.pattern.permute.xlu0 0
  %546 = vperm.xlu0 %545, %v392
  %v547 = vpop.permute.xlu0 %546
  %550 = vset.pattern.permute.xlu0 0
  %551 = vperm.xlu0 %550, %v393
  %v552 = vpop.permute.xlu0 %551
  %v586 = vunpack.c.l.b16 %v330
  %v587 = vunpack.c.l.b16 %v331
  %v588 = vunpack.c.l.b16 %v332
  %v589 = vunpack.c.l.b16 %v333
  %v590 = vunpack.c.l.b16 %v334
  %v591 = vunpack.c.l.b16 %v335
  %v592 = vunpack.c.l.b16 %v336
  %v593 = vunpack.c.l.b16 %v337
  %v594 = vunpack.c.l.b16 %v338
  %v595 = vunpack.c.l.b16 %v339
  %v596 = vunpack.c.l.b16 %v340
  %v597 = vunpack.c.l.b16 %v341
  %v598 = vunpack.c.l.b16 %v342
  %v599 = vunpack.c.l.b16 %v343
  %v600 = vunpack.c.l.b16 %v344
  %v601 = vunpack.c.l.b16 %v345
  %v602 = vunpack.c.l.b16 %v346
  %v603 = vunpack.c.l.b16 %v347
  %v604 = vunpack.c.l.b16 %v348
  %v605 = vunpack.c.l.b16 %v349
  %v606 = vunpack.c.l.b16 %v350
  %v607 = vunpack.c.l.b16 %v351
  %v608 = vunpack.c.l.b16 %v352
  %v609 = vunpack.c.l.b16 %v353
  %v610 = vunpack.c.l.b16 %v354
  %v611 = vunpack.c.l.b16 %v355
  %v612 = vunpack.c.l.b16 %v356
  %v613 = vunpack.c.l.b16 %v357
  %v614 = vunpack.c.l.b16 %v358
  %v615 = vunpack.c.l.b16 %v359
  %v616 = vunpack.c.l.b16 %v360
  %v617 = vunpack.c.l.b16 %v361
  %v618 = vpack.c.b16 %v587, %v586
  %v619 = vpack.c.b16 %v589, %v588
  %v620 = vpack.c.b16 %v591, %v590
  %v621 = vpack.c.b16 %v593, %v592
  %v622 = vpack.c.b16 %v595, %v594
  %v623 = vpack.c.b16 %v597, %v596
  %v624 = vpack.c.b16 %v599, %v598
  %v625 = vpack.c.b16 %v601, %v600
  %v626 = vpack.c.b16 %v603, %v602
  %v627 = vpack.c.b16 %v605, %v604
  %v628 = vpack.c.b16 %v607, %v606
  %v629 = vpack.c.b16 %v609, %v608
  %v630 = vpack.c.b16 %v611, %v610
  %v631 = vpack.c.b16 %v613, %v612
  %v632 = vpack.c.b16 %v615, %v614
  %v633 = vpack.c.b16 %v617, %v616
  %650 = vmatprep.subr.bf16.mxu0 0
  %651 = vmatpush1.bf16.msra.mxu0 %v322
  %652 = vmatprep.subr.bf16.mxu0 0
  %653 = vmatpush1.bf16.msra.mxu0 %v323
  %654 = vmatprep.subr.bf16.mxu0 0
  %655 = vmatpush1.bf16.msra.mxu0 %v324
  %656 = vmatprep.subr.bf16.mxu0 0
  %657 = vmatpush1.bf16.msra.mxu0 %v325
  %658 = vmatprep.subr.bf16.mxu0 0
  %659 = vmatpush1.bf16.msra.mxu0 %v326
  %660 = vmatprep.subr.bf16.mxu0 0
  %661 = vmatpush1.bf16.msra.mxu0 %v327
  %662 = vmatprep.subr.bf16.mxu0 0
  %663 = vmatpush1.bf16.msra.mxu0 %v328
  %664 = vmatprep.subr.bf16.mxu0 0
  %665 = vmatpush1.bf16.msra.mxu0 %v329
  %666 = vmatprep.subr.bf16.mxu0 0
  %667 = vmatpush1.bf16.msra.mxu0 0
  %668 = vmatprep.subr.bf16.mxu0 0
  %669 = vmatpush1.bf16.msra.mxu0 0
  %670 = vmatprep.subr.bf16.mxu0 0
  %671 = vmatpush1.bf16.msra.mxu0 0
  %672 = vmatprep.subr.bf16.mxu0 0
  %673 = vmatpush1.bf16.msra.mxu0 0
  %674 = vmatprep.subr.bf16.mxu0 0
  %675 = vmatpush1.bf16.msra.mxu0 0
  %676 = vmatprep.subr.bf16.mxu0 0
  %677 = vmatpush1.bf16.msra.mxu0 0
  %678 = vmatprep.subr.bf16.mxu0 0
  %679 = vmatpush1.bf16.msra.mxu0 0
  %680 = vmatprep.subr.bf16.mxu0 0
  %681 = vmatpush1.bf16.msra.mxu0 0
  %682 = vmatprep.mubr.bf16.mxu0 0
  %683 = vmatmul.mubr.bf16.gmra.mrb[0].mxu0 %v618
  %v684 = vpop.f32.mrb[0].mxu0
  %v685 = vadd.f32 %v397, %v684
  %v686 = vpop.f32.mrb[0].mxu0
  %v687 = vpop.f32.mrb[0].mxu0
  %v688 = vadd.f32 %v402, %v687
  %v689 = vpop.f32.mrb[0].mxu0
  %690 = vmatprep.mubr.bf16.mxu0 0
  %691 = vmatmul.mubr.bf16.gmra.mrb[0].mxu0 %v619
  %v692 = vpop.f32.mrb[0].mxu0
  %v693 = vadd.f32 %v407, %v692
  %v694 = vpop.f32.mrb[0].mxu0
  %v695 = vpop.f32.mrb[0].mxu0
  %v696 = vadd.f32 %v412, %v695
  %v697 = vpop.f32.mrb[0].mxu0
  %698 = vmatprep.mubr.bf16.mxu0 0
  %699 = vmatmul.mubr.bf16.gmra.mrb[0].mxu0 %v620
  %v700 = vpop.f32.mrb[0].mxu0
  %v701 = vadd.f32 %v417, %v700
  %v702 = vpop.f32.mrb[0].mxu0
  %v703 = vpop.f32.mrb[0].mxu0
  %v704 = vadd.f32 %v422, %v703
  %v705 = vpop.f32.mrb[0].mxu0
  %706 = vmatprep.mubr.bf16.mxu0 0
  %707 = vmatmul.mubr.bf16.gmra.mrb[0].mxu0 %v621
  %v708 = vpop.f32.mrb[0].mxu0
  %v709 = vadd.f32 %v427, %v708
  %v710 = vpop.f32.mrb[0].mxu0
  %v711 = vpop.f32.mrb[0].mxu0
  %v712 = vadd.f32 %v432, %v711
  %v713 = vpop.f32.mrb[0].mxu0
  %714 = vmatprep.mubr.bf16.mxu0 0
  %715 = vmatmul.mubr.bf16.gmra.mrb[0].mxu0 %v622
  %v716 = vpop.f32.mrb[0].mxu0
  %v717 = vadd.f32 %v437, %v716
  %v718 = vpop.f32.mrb[0].mxu0
  %v719 = vpop.f32.mrb[0].mxu0
  %v720 = vadd.f32 %v442, %v719
  %v721 = vpop.f32.mrb[0].mxu0
  %722 = vmatprep.mubr.bf16.mxu0 0
  %723 = vmatmul.mubr.bf16.gmra.mrb[0].mxu0 %v623
  %v724 = vpop.f32.mrb[0].mxu0
  %v725 = vadd.f32 %v447, %v724
  %v726 = vpop.f32.mrb[0].mxu0
  %v727 = vpop.f32.mrb[0].mxu0
  %v728 = vadd.f32 %v452, %v727
  %v729 = vpop.f32.mrb[0].mxu0
  %730 = vmatprep.mubr.bf16.mxu0 0
  %731 = vmatmul.mubr.bf16.gmra.mrb[0].mxu0 %v624
  %v732 = vpop.f32.mrb[0].mxu0
  %v733 = vadd.f32 %v457, %v732
  %v734 = vpop.f32.mrb[0].mxu0
  %v735 = vpop.f32.mrb[0].mxu0
  %v736 = vadd.f32 %v462, %v735
  %v737 = vpop.f32.mrb[0].mxu0
  %738 = vmatprep.mubr.bf16.mxu0 0
  %739 = vmatmul.mubr.bf16.gmra.mrb[0].mxu0 %v625
  %v740 = vpop.f32.mrb[0].mxu0
  %v741 = vadd.f32 %v467, %v740
  %v742 = vpop.f32.mrb[0].mxu0
  %v743 = vpop.f32.mrb[0].mxu0
  %v744 = vadd.f32 %v472, %v743
  %v745 = vpop.f32.mrb[0].mxu0
  %746 = vmatprep.mubr.bf16.mxu0 0
  %747 = vmatmul.mubr.bf16.gmra.mrb[0].mxu0 %v626
  %v748 = vpop.f32.mrb[0].mxu0
  %v749 = vadd.f32 %v477, %v748
  %v750 = vpop.f32.mrb[0].mxu0
  %v751 = vpop.f32.mrb[0].mxu0
  %v752 = vadd.f32 %v482, %v751
  %v753 = vpop.f32.mrb[0].mxu0
  %754 = vmatprep.mubr.bf16.mxu0 0
  %755 = vmatmul.mubr.bf16.gmra.mrb[0].mxu0 %v627
  %v756 = vpop.f32.mrb[0].mxu0
  %v757 = vadd.f32 %v487, %v756
  %v758 = vpop.f32.mrb[0].mxu0
  %v759 = vpop.f32.mrb[0].mxu0
  %v760 = vadd.f32 %v492, %v759
  %v761 = vpop.f32.mrb[0].mxu0
  %762 = vmatprep.mubr.bf16.mxu0 0
  %763 = vmatmul.mubr.bf16.gmra.mrb[0].mxu0 %v628
  %v764 = vpop.f32.mrb[0].mxu0
  %v765 = vadd.f32 %v497, %v764
  %v766 = vpop.f32.mrb[0].mxu0
  %v767 = vpop.f32.mrb[0].mxu0
  %v768 = vadd.f32 %v502, %v767
  %v769 = vpop.f32.mrb[0].mxu0
  %770 = vmatprep.mubr.bf16.mxu0 0
  %771 = vmatmul.mubr.bf16.gmra.mrb[0].mxu0 %v629
  %v772 = vpop.f32.mrb[0].mxu0
  %v773 = vadd.f32 %v507, %v772
  %v774 = vpop.f32.mrb[0].mxu0
  %v775 = vpop.f32.mrb[0].mxu0
  %v776 = vadd.f32 %v512, %v775
  %v777 = vpop.f32.mrb[0].mxu0
  %778 = vmatprep.mubr.bf16.mxu0 0
  %779 = vmatmul.mubr.bf16.gmra.mrb[0].mxu0 %v630
  %v780 = vpop.f32.mrb[0].mxu0
  %v781 = vadd.f32 %v517, %v780
  %v782 = vpop.f32.mrb[0].mxu0
  %v783 = vpop.f32.mrb[0].mxu0
  %v784 = vadd.f32 %v522, %v783
  %v785 = vpop.f32.mrb[0].mxu0
  %786 = vmatprep.mubr.bf16.mxu0 0
  %787 = vmatmul.mubr.bf16.gmra.mrb[0].mxu0 %v631
  %v788 = vpop.f32.mrb[0].mxu0
  %v789 = vadd.f32 %v527, %v788
  %v790 = vpop.f32.mrb[0].mxu0
  %v791 = vpop.f32.mrb[0].mxu0
  %v792 = vadd.f32 %v532, %v791
  %v793 = vpop.f32.mrb[0].mxu0
  %794 = vmatprep.mubr.bf16.mxu0 0
  %795 = vmatmul.mubr.bf16.gmra.mrb[0].mxu0 %v632
  %v796 = vpop.f32.mrb[0].mxu0
  %v797 = vadd.f32 %v537, %v796
  %v798 = vpop.f32.mrb[0].mxu0
  %v799 = vpop.f32.mrb[0].mxu0
  %v800 = vadd.f32 %v542, %v799
  %v801 = vpop.f32.mrb[0].mxu0
  %802 = vmatprep.mubr.bf16.mxu0 0
  %803 = vmatmul.mubr.bf16.gmra.mrb[0].mxu0 %v633
  %v804 = vpop.f32.mrb[0].mxu0
  %v805 = vadd.f32 %v547, %v804
  %v806 = vpop.f32.mrb[0].mxu0
  %v807 = vpop.f32.mrb[0].mxu0
  %v808 = vadd.f32 %v552, %v807
  %v809 = vpop.f32.mrb[0].mxu0
  %810 = vdwg.mxu0
  %v811 = vmax.f32 %v685, 0.0
  %v812 = vmax.f32 %v688, 0.0
  %v813 = vmax.f32 %v693, 0.0
  %v814 = vmax.f32 %v696, 0.0
  %v815 = vmax.f32 %v701, 0.0
  %v816 = vmax.f32 %v704, 0.0
  %v817 = vmax.f32 %v709, 0.0
  %v818 = vmax.f32 %v712, 0.0
  %v819 = vmax.f32 %v717, 0.0
  %v820 = vmax.f32 %v720, 0.0
  %v821 = vmax.f32 %v725, 0.0
  %v822 = vmax.f32 %v728, 0.0
  %v823 = vmax.f32 %v733, 0.0
  %v824 = vmax.f32 %v736, 0.0
  %v825 = vmax.f32 %v741, 0.0
  %v826 = vmax.f32 %v744, 0.0
  %v827 = vmax.f32 %v749, 0.0
  %v828 = vmax.f32 %v752, 0.0
  %v829 = vmax.f32 %v757, 0.0
  %v830 = vmax.f32 %v760, 0.0
  %v831 = vmax.f32 %v765, 0.0
  %v832 = vmax.f32 %v768, 0.0
  %v833 = vmax.f32 %v773, 0.0
  %v834 = vmax.f32 %v776, 0.0
  %v835 = vmax.f32 %v781, 0.0
  %v836 = vmax.f32 %v784, 0.0
  %v837 = vmax.f32 %v789, 0.0
  %v838 = vmax.f32 %v792, 0.0
  %v839 = vmax.f32 %v797, 0.0
  %v840 = vmax.f32 %v800, 0.0
  %v841 = vmax.f32 %v805, 0.0
  %v842 = vmax.f32 %v808, 0.0
  %v843 = vpack.c.bf16 %v812, %v811
  %v844 = vpack.c.bf16 %v814, %v813
  %v845 = vpack.c.bf16 %v816, %v815
  %v846 = vpack.c.bf16 %v818, %v817
  %v847 = vpack.c.bf16 %v820, %v819
  %v848 = vpack.c.bf16 %v822, %v821
  %v849 = vpack.c.bf16 %v824, %v823
  %v850 = vpack.c.bf16 %v826, %v825
  %v851 = vpack.c.bf16 %v828, %v827
  %v852 = vpack.c.bf16 %v830, %v829
  %v853 = vpack.c.bf16 %v832, %v831
  %v854 = vpack.c.bf16 %v834, %v833
  %v855 = vpack.c.bf16 %v836, %v835
  %v856 = vpack.c.bf16 %v838, %v837
  %v857 = vpack.c.bf16 %v840, %v839
  %v858 = vpack.c.bf16 %v842, %v841
  %v859 = vld [vmem:[%s5] sm:$0xff]
  %v860 = vld [vmem:[%s6] sm:$0xff]
  %862 = vset.pattern.permute.xlu0 0
  %863 = vperm.xlu0 %862, %v860
  %v864 = vpop.permute.xlu0 %863
  %v867 = vunpack.c.l.b16 %v859
  %v868 = vunpack.c.h.b16 %v859
  %v869 = vpack.c.b16 %v867, %v867
  %v870 = vpack.c.b16 %v868, %v868
  %873 = vmatprep.subr.bf16.mxu0 0
  %874 = vmatpush1.bf16.msra.mxu0 %v843
  %875 = vmatprep.subr.bf16.mxu0 0
  %876 = vmatpush1.bf16.msra.mxu0 %v844
  %877 = vmatprep.subr.bf16.mxu0 0
  %878 = vmatpush1.bf16.msra.mxu0 %v845
  %879 = vmatprep.subr.bf16.mxu0 0
  %880 = vmatpush1.bf16.msra.mxu0 %v846
  %881 = vmatprep.subr.bf16.mxu0 0
  %882 = vmatpush1.bf16.msra.mxu0 %v847
  %883 = vmatprep.subr.bf16.mxu0 0
  %884 = vmatpush1.bf16.msra.mxu0 %v848
  %885 = vmatprep.subr.bf16.mxu0 0
  %886 = vmatpush1.bf16.msra.mxu0 %v849
  %887 = vmatprep.subr.bf16.mxu0 0
  %888 = vmatpush1.bf16.msra.mxu0 %v850
  %889 = vmatprep.subr.bf16.mxu0 0
  %890 = vmatpush1.bf16.msra.mxu0 %v851
  %891 = vmatprep.subr.bf16.mxu0 0
  %892 = vmatpush1.bf16.msra.mxu0 %v852
  %893 = vmatprep.subr.bf16.mxu0 0
  %894 = vmatpush1.bf16.msra.mxu0 %v853
  %895 = vmatprep.subr.bf16.mxu0 0
  %896 = vmatpush1.bf16.msra.mxu0 %v854
  %897 = vmatprep.subr.bf16.mxu0 0
  %898 = vmatpush1.bf16.msra.mxu0 %v855
  %899 = vmatprep.subr.bf16.mxu0 0
  %900 = vmatpush1.bf16.msra.mxu0 %v856
  %901 = vmatprep.subr.bf16.mxu0 0
  %902 = vmatpush1.bf16.msra.mxu0 %v857
  %903 = vmatprep.subr.bf16.mxu0 0
  %904 = vmatpush1.bf16.msra.mxu0 %v858
  %905 = vmatprep.mubr.bf16.mxu0 %v870
  %906 = vmatmul.mubr.bf16.gmra.mrb[0].mxu0 %v869
  %v907 = vpop.f32.mrb[0].mxu0
  %v908 = vadd.f32 %v864, %v907
  %v909 = vpop.f32.mrb[0].mxu0
  %v910 = vpop.f32.mrb[0].mxu0
  %v911 = vpop.f32.mrb[0].mxu0
  %912 = vdwg.mxu0
  %913 = vst [vmem:[%s7] sm:$0xff] %v908
  // Predicated region
  $region30: #{critic_forward.1} parent=0 // pred_check
    _
  $region31: #{critic_forward.1} parent=0 // pred_check_branch
    %915 = sbr.rel (0) target = $region33
  $region32: #{critic_forward.1} parent=0 // pred_region
    _
  $region33: #{critic_forward.1} parent=0 // pred_fallthru
    _
  // Predicated region
  $region34: #{critic_forward.1} parent=0 // pred_check
    _
  $region35: #{critic_forward.1} parent=0 // pred_check_branch
    %917 = sbr.rel (0) target = $region37
  $region36: #{critic_forward.1} parent=0 // pred_region
    _
  $region37: #{critic_forward.1} parent=0 // pred_fallthru
    _

</llo_original>
